<compile_context>
chip_gen: v6e
topology: v6e:2x2x1
jax: 0.10.0
libtpu: 0.0.40
codegen_flags: <defaults>
</compile_context>

<pallas_src>
import math

import jax
import jax.numpy as jnp
import numpy as np
from jax.experimental import pallas as pl
from jax.experimental.pallas import tpu as pltpu

_LANE = 128
_MAX_LANE_WIDTH = 4096          # widest lane-dense 2-D view we try
_TARGET_CHUNK_BYTES = 8 << 20   # ~8 MiB per DMA chunk
_MAX_INFLIGHT = 4               # at most 4 concurrent HBM->HBM DMAs


def _resolve_shape(numel, shape):
    """Resolve a torch.view-style shape (supports a single -1)."""
    shape = tuple(int(s) for s in shape)
    if shape.count(-1) > 1:
        raise ValueError("only one dimension can be inferred")
    if -1 in shape:
        known = 1
        for s in shape:
            if s != -1:
                known *= s
        if known == 0 or numel % known != 0:
            raise ValueError(f"cannot reshape {numel} elements into {shape}")
        shape = tuple(numel // known if s == -1 else s for s in shape)
    if math.prod(shape) != numel:
        raise ValueError(f"shape {shape} is invalid for input of size {numel}")
    return shape


def _sublane_multiple(dtype):
    # Sub-32-bit dtypes pack along sublanes: keep chunk-row counts vreg-dense.
    itemsize = jnp.dtype(dtype).itemsize
    return max(8, 32 // max(itemsize, 1))


def _pick_lane_width(numel):
    """Largest multiple of 128 (<= _MAX_LANE_WIDTH) that divides numel."""
    w = min(_MAX_LANE_WIDTH, (numel // _LANE) * _LANE)
    while w >= _LANE:
        if numel % w == 0:
            return w
        w -= _LANE
    return None


def _make_dma_copy_kernel(chunk_bounds):
    """HBM->HBM streaming copy: all chunks issued, then all waited.

    chunk_bounds: tuple of (start_row, n_rows) Python ints (static shapes).
    """

    def kernel(x_hbm, y_hbm, sems):
        copies = []
        for i, (start, nrows) in enumerate(chunk_bounds):
            cp = pltpu.make_async_copy(
                x_hbm.at[pl.ds(start, nrows)],
                y_hbm.at[pl.ds(start, nrows)],
                sems.at[i],
            )
            cp.start()
            copies.append(cp)
        for cp in copies:
            cp.wait()

    return kernel


def pallas_reshape(x, shape, copy_through_pallas=False):
    """Equivalent of Reshape(shape).forward(x) == x.view(shape).

    Default is the metadata-only path (zero HBM traffic, identical to what a
    contiguous torch .view costs).  copy_through_pallas=True routes the data
    through a direct HBM->HBM DMA copy kernel (demonstration / benchmarking).
    """
    numel = x.size
    out_shape = _resolve_shape(numel, shape)

    lane_width = _pick_lane_width(numel) if numel > 0 else None
    if not copy_through_pallas or lane_width is None:
        # Metadata-only path (also the fallback when numel is not a multiple
        # of 128): exact torch.view semantics, costs nothing.
        return x.reshape(out_shape)

    itemsize = jnp.dtype(x.dtype).itemsize
    rows = numel // lane_width
    sub = _sublane_multiple(x.dtype)
    total_bytes = numel * itemsize

    # Split rows into up to _MAX_INFLIGHT sublane-aligned chunks (~8 MiB
    # each); the last chunk is clamped exactly so no DMA writes out of bounds.
    n_chunks = int(min(_MAX_INFLIGHT, max(1, total_bytes // _TARGET_CHUNK_BYTES), rows))
    base = -(-rows // n_chunks)                       # ceil divide
    base = max(sub, ((base + sub - 1) // sub) * sub)  # sublane-aligned
    chunk_bounds = []
    start = 0
    while start < rows:
        nrows = min(base, rows - start)
        chunk_bounds.append((start, nrows))
        start += nrows
    chunk_bounds = tuple(chunk_bounds)

    # Lane-dense 2-D view of the contiguous data (metadata-only reshape).
    x2d = x.reshape(rows, lane_width)

    y2d = pl.pallas_call(
        _make_dma_copy_kernel(chunk_bounds),
        out_shape=jax.ShapeDtypeStruct((rows, lane_width), x.dtype),
        in_specs=[pl.BlockSpec(memory_space=pl.ANY)],
        out_specs=pl.BlockSpec(memory_space=pl.ANY),
        scratch_shapes=[pltpu.SemaphoreType.DMA((len(chunk_bounds),))],
        cost_estimate=pl.CostEstimate(
            flops=0,
            transcendentals=0,
            bytes_accessed=2 * total_bytes,
        ),
    )(x2d)

    # Final reinterpretation to the requested shape (metadata only).
    return y2d.reshape(out_shape)


class Reshape:
    """JAX/Pallas mirror of the PyTorch Reshape module."""

    def __init__(self, shape, use_pallas_copy=False):
        self.shape = tuple(shape)
        self.use_pallas_copy = use_pallas_copy

    def __call__(self, x):
        return pallas_reshape(x, self.shape, copy_through_pallas=self.use_pallas_copy)

    def __repr__(self):
        return self.__class__.__name__ + " (reshape to size: {})".format(
            " ".join(str(s) for s in self.shape)
        )


if __name__ == "__main__":
    key = jax.random.PRNGKey(0)
    # NCHW input, small shapes: batch=2, channels=4, spatial=16x16.
    x = jax.random.normal(key, (2, 4, 16, 16), dtype=jnp.float32)
    ref = np.asarray(x).reshape(2, 4, 256)

    # Production path: metadata-only reshape (matches torch .view cost).
    module = Reshape((2, 4, 256))
    y = jax.block_until_ready(module(x))
    assert y.shape == (2, 4, 256)
    assert y.dtype == x.dtype
    np.testing.assert_array_equal(np.asarray(y), ref)

    # Demonstration path: direct HBM->HBM DMA copy kernel (opt-in).
    y_k = jax.block_until_ready(pallas_reshape(x, (2, 4, 256), copy_through_pallas=True))
    np.testing.assert_array_equal(np.asarray(y_k), ref)

    # Pallas path with multiple rows and -1 inference.
    x_big = jax.random.normal(key, (8, 4, 16, 16), dtype=jnp.float32)
    y_big = jax.block_until_ready(
        pallas_reshape(x_big, (8, -1), copy_through_pallas=True)
    )
    np.testing.assert_array_equal(np.asarray(y_big), np.asarray(x_big).reshape(8, -1))

    # -1 inference on the default (metadata-only) path, like x.view(2, -1).
    y2 = jax.block_until_ready(Reshape((2, -1))(x))
    np.testing.assert_array_equal(np.asarray(y2), np.asarray(x).reshape(2, -1))

    # Non-128-multiple size falls back to metadata-only reshape.
    x3 = jax.random.normal(key, (3, 5, 7), dtype=jnp.float32)
    y3 = jax.block_until_ready(Reshape((5, 21))(x3))
    np.testing.assert_array_equal(np.asarray(y3), np.asarray(x3).reshape(5, 21))

    print("KERNEL_OK")
</pallas_src>

<mosaic_0001>
module attributes {stable_mosaic.version = 11 : i64} {
  func.func @kernel(%arg0: memref<1x2048xf32, #tpu.memory_space<any>>, %arg1: memref<1x2048xf32, #tpu.memory_space<any>>, %arg2: memref<1x!tpu.dma_semaphore, #tpu.memory_space<semaphore_mem>>) attributes {dimension_semantics = [], scalar_prefetch = 0 : i64, scratch_operands = 1 : i64, tpu.core_type = #tpu.core_type<tc>} {
    %c0_i32 = arith.constant 0 : i32
    %c0_i32_0 = arith.constant 0 : i32
    %c0_i32_1 = arith.constant 0 : i32
    %0 = tpu.memref_slice %arg0[%c0_i32_0, %c0_i32_1] : memref<1x2048xf32, #tpu.memory_space<any>> -> memref<1x2048xf32, #tpu.memory_space<any>>
    %c0_i32_2 = arith.constant 0 : i32
    %c0_i32_3 = arith.constant 0 : i32
    %1 = tpu.memref_slice %arg1[%c0_i32_2, %c0_i32_3] : memref<1x2048xf32, #tpu.memory_space<any>> -> memref<1x2048xf32, #tpu.memory_space<any>>
    %2 = tpu.memref_slice %arg2[%c0_i32] : memref<1x!tpu.dma_semaphore, #tpu.memory_space<semaphore_mem>> -> memref<1x!tpu.dma_semaphore, #tpu.memory_space<semaphore_mem>>
    %3 = tpu.memref_squeeze %2 : memref<1x!tpu.dma_semaphore, #tpu.memory_space<semaphore_mem>> -> memref<!tpu.dma_semaphore, #tpu.memory_space<semaphore_mem>>
    tpu.enqueue_dma source(%0 : memref<1x2048xf32, #tpu.memory_space<any>>) target(%1 : memref<1x2048xf32, #tpu.memory_space<any>>) target_semaphore(%3 : memref<!tpu.dma_semaphore, #tpu.memory_space<semaphore_mem>>)
    %c0_i32_4 = arith.constant 0 : i32
    %c0_i32_5 = arith.constant 0 : i32
    %c0_i32_6 = arith.constant 0 : i32
    %4 = tpu.memref_slice %arg0[%c0_i32_5, %c0_i32_6] : memref<1x2048xf32, #tpu.memory_space<any>> -> memref<1x2048xf32, #tpu.memory_space<any>>
    %c0_i32_7 = arith.constant 0 : i32
    %c0_i32_8 = arith.constant 0 : i32
    %5 = tpu.memref_slice %arg1[%c0_i32_7, %c0_i32_8] : memref<1x2048xf32, #tpu.memory_space<any>> -> memref<1x2048xf32, #tpu.memory_space<any>>
    %6 = tpu.memref_slice %arg2[%c0_i32_4] : memref<1x!tpu.dma_semaphore, #tpu.memory_space<semaphore_mem>> -> memref<1x!tpu.dma_semaphore, #tpu.memory_space<semaphore_mem>>
    %7 = tpu.memref_squeeze %6 : memref<1x!tpu.dma_semaphore, #tpu.memory_space<semaphore_mem>> -> memref<!tpu.dma_semaphore, #tpu.memory_space<semaphore_mem>>
    tpu.wait_dma2 semaphore(%7 : memref<!tpu.dma_semaphore, #tpu.memory_space<semaphore_mem>>) src(%4 : memref<1x2048xf32, #tpu.memory_space<any>>) dst(%5 : memref<1x2048xf32, #tpu.memory_space<any>>)
    return
  }
}

</mosaic_0001>

<llo_original>
// kernel: tpu_custom_call.1
$region0: #{tpu_custom_call.1}
  #allocation0 [shape = 'u32[]', space=smem, size = 0x4, offset = 0x4, fixed_abs, tag = 'smem constant byte address 0x4 - core index']
  #allocation1 [shape = 'u32[144,128]{1,0:T(1,128)}', space=vmem, size = 0x12000, scoped, tag = 'internal scratch']
  #allocation2 [shape = 's32[1]{0}', space=sflag, size = 0x4, scoped, tag = 'scratch operand']
  #allocation3 [shape = 's32[]', space=sflag, size = 0x4, offset = 0, fixed_abs, tag = 'sflag constant byte address 0x0 - dummy sync flag']
  #allocation4 [shape = 'u32[0]{0}', space=smem, size = 0, offset = 0, fixed_abs, tag = 'smem constant byte address 0x0 - null']
  %s0 = inlined_call_operand.hbm [shape: f32[1,2048], index: 0, kind: input, shape index: {}]
  %s1 = inlined_call_operand.hbm [shape: f32[1,2048], index: 1, kind: output, shape index: {}]
  %s2 = sld [smem:[#allocation0]]
  $region2: #{tpu_custom_call.1} parent=0
    _
  %s4 = ssub.s32 1, %s2
  %s5 = scalar_select 0, %s4, %s2
  %s7 = sshll.u32 1, 14
  %s8 = sxor.u32 4294967295, %s7
  %12 = dma.general %s0, 256, %s1, [#allocation2], 131072, [#allocation4], 0, 0
  %s13 = smul.u32 1, 16
  %s14 = sshll.u32 %s13, 4
  %15 = dma.done [#allocation2], %s14
  %16 = vsyncmov [#allocation2]
  %s17 = vpop.sfrf %16
  %p18 = scmp.eq.s32.totalorder %s17, 0
  %p19 = pneg %p18
  %21 = shalt.err (%p19)

</llo_original>
